<compile_context>
chip_gen: v7x
topology: tpu7x:2x2x1
jax: 0.10.0
libtpu: 0.0.40
codegen_flags: <defaults>
</compile_context>

<pallas_src>
import functools

import jax
import jax.numpy as jnp
from jax.experimental import pallas as pl
from jax.experimental.pallas import tpu as pltpu


def _round_up(x, m):
    return (x + m - 1) // m * m


# ---------------------------------------------------------------------------
# Kernel
# ---------------------------------------------------------------------------
def _lstm_cell_kernel(xh_ref, c_ref, w_ref, b_ref, h_out_ref, c_out_ref):
    Hp = c_ref.shape[1]  # padded hidden, multiple of 128

    # Single fused MXU matmul: (TM, F+Hp) @ (F+Hp, 4*Hp), f32 accumulation.
    gates = jnp.dot(xh_ref[...], w_ref[...],
                    preferred_element_type=jnp.float32)
    gates = gates + b_ref[...]

    # Hp is a multiple of 128 -> these lane slices are aligned (free views).
    i_t = jax.nn.sigmoid(gates[:, 0 * Hp:1 * Hp])
    f_t = jax.nn.sigmoid(gates[:, 1 * Hp:2 * Hp])
    c_hat = jnp.tanh(gates[:, 2 * Hp:3 * Hp])
    o_t = jax.nn.sigmoid(gates[:, 3 * Hp:4 * Hp])

    c_new = f_t * c_ref[...].astype(jnp.float32) + i_t * c_hat
    h_new = o_t * jnp.tanh(c_new)

    c_out_ref[...] = c_new.astype(c_out_ref.dtype)
    h_out_ref[...] = h_new.astype(h_out_ref.dtype)


# ---------------------------------------------------------------------------
# Fused weight construction (run once, outside the per-timestep path)
# ---------------------------------------------------------------------------
def prepare_fused_weights(params, feature_dim, hidden,
                          *, compute_dtype=jnp.float32):
    """Build fused, gate-padded weights once.

    Returns
      W : (F + Hp, 4*Hp) in `compute_dtype`   (rows [0:F] = x weights,
                                               rows [F:F+H] = h weights,
                                               padded rows/cols are zero)
      b : (1, 4*Hp) float32
    with Hp = round_up(hidden, 128) so gate slices / outputs are lane-aligned.
    """
    Hp = _round_up(hidden, 128)
    W = jnp.zeros((feature_dim + Hp, 4 * Hp), jnp.float32)
    b = jnp.zeros((1, 4 * Hp), jnp.float32)
    gate_names = (("W_xi", "W_hi", "b_i"),
                  ("W_xf", "W_hf", "b_f"),
                  ("W_xc_hat", "W_hc_hat", "b_c_hat"),
                  ("W_xo", "W_ho", "b_o"))
    for g, (wx, wh, bb) in enumerate(gate_names):
        col = g * Hp
        W = W.at[:feature_dim, col:col + hidden].set(params[wx])
        W = W.at[feature_dim:feature_dim + hidden,
                 col:col + hidden].set(params[wh])
        b = b.at[0, col:col + hidden].set(params[bb])
    return W.astype(compute_dtype), b


# ---------------------------------------------------------------------------
# Pallas wrapper (one timestep)
# ---------------------------------------------------------------------------
@functools.partial(jax.jit, static_argnames=("hidden", "block_m"))
def lstm_cell_pallas(x, h_t, c_t, W_fused, b_fused, *, hidden, block_m=512):
    """x: (bs, num_nodes, F); h_t, c_t: (bs*num_nodes, hidden).

    W_fused/b_fused come from prepare_fused_weights (built once per model).
    Returns (h_new, c_new), both (bs*num_nodes, hidden) float32.
    """
    bs, num_nodes, feature_dim = x.shape
    M = bs * num_nodes
    Hp = W_fused.shape[1] // 4
    compute_dtype = W_fused.dtype

    # Fuse [x | h] along the lane axis so the kernel does a single matmul.
    x2d = x.reshape(M, feature_dim).astype(compute_dtype)
    h_pad = jnp.pad(h_t.astype(compute_dtype), ((0, 0), (0, Hp - hidden)))
    c_pad = jnp.pad(c_t.astype(jnp.float32), ((0, 0), (0, Hp - hidden)))
    xh = jnp.concatenate([x2d, h_pad], axis=1)            # (M, F + Hp)

    # Tile the M axis; pad M up to a multiple of the tile.
    tm = block_m if M >= block_m else _round_up(M, 8)
    Mp = _round_up(M, tm)
    if Mp != M:
        xh = jnp.pad(xh, ((0, Mp - M), (0, 0)))
        c_pad = jnp.pad(c_pad, ((0, Mp - M), (0, 0)))

    K = feature_dim + Hp
    grid = (Mp // tm,)

    h_out, c_out = pl.pallas_call(
        _lstm_cell_kernel,
        out_shape=(
            jax.ShapeDtypeStruct((Mp, Hp), jnp.float32),
            jax.ShapeDtypeStruct((Mp, Hp), jnp.float32),
        ),
        grid_spec=pltpu.PrefetchScalarGridSpec(
            num_scalar_prefetch=0,
            grid=grid,
            in_specs=[
                pl.BlockSpec((tm, K), lambda i: (i, 0)),        # [x|h] tile
                pl.BlockSpec((tm, Hp), lambda i: (i, 0)),       # c tile
                pl.BlockSpec((K, 4 * Hp), lambda i: (0, 0)),    # W (resident)
                pl.BlockSpec((1, 4 * Hp), lambda i: (0, 0)),    # b (resident)
            ],
            out_specs=(
                pl.BlockSpec((tm, Hp), lambda i: (i, 0)),       # h_new
                pl.BlockSpec((tm, Hp), lambda i: (i, 0)),       # c_new
            ),
        ),
        compiler_params=pltpu.CompilerParams(
            dimension_semantics=("parallel",),
        ),
    )(xh, c_pad, W_fused, b_fused)

    return h_out[:M, :hidden], c_out[:M, :hidden]


# ---------------------------------------------------------------------------
# Parameter init (mirrors the PyTorch module) + pure-JAX reference
# ---------------------------------------------------------------------------
def _xavier_uniform(key, shape):
    fan_in, fan_out = shape
    limit = (6.0 / (fan_in + fan_out)) ** 0.5
    return jax.random.uniform(key, shape, jnp.float32, -limit, limit)


def init_lstm_params(key, feature_dim, hidden_size):
    keys = jax.random.split(key, 8)
    return {
        "W_xi": _xavier_uniform(keys[0], (feature_dim, hidden_size)),
        "W_hi": _xavier_uniform(keys[1], (hidden_size, hidden_size)),
        "b_i": jnp.zeros((hidden_size,), jnp.float32),
        "W_xf": _xavier_uniform(keys[2], (feature_dim, hidden_size)),
        "W_hf": _xavier_uniform(keys[3], (hidden_size, hidden_size)),
        "b_f": jnp.zeros((hidden_size,), jnp.float32),
        "W_xc_hat": _xavier_uniform(keys[4], (feature_dim, hidden_size)),
        "W_hc_hat": _xavier_uniform(keys[5], (hidden_size, hidden_size)),
        "b_c_hat": jnp.zeros((hidden_size,), jnp.float32),
        "W_xo": _xavier_uniform(keys[6], (feature_dim, hidden_size)),
        "W_ho": _xavier_uniform(keys[7], (hidden_size, hidden_size)),
        "b_o": jnp.zeros((hidden_size,), jnp.float32),
    }


def lstm_cell_ref(x, h_t, c_t, p):
    """Pure-JAX reference mirroring the PyTorch forward exactly."""
    bs, num_nodes, feature_dim = x.shape
    x2d = x.reshape(bs * num_nodes, feature_dim)
    i_t = jax.nn.sigmoid(x2d @ p["W_xi"] + h_t @ p["W_hi"] + p["b_i"])
    f_t = jax.nn.sigmoid(x2d @ p["W_xf"] + h_t @ p["W_hf"] + p["b_f"])
    c_hat = jnp.tanh(x2d @ p["W_xc_hat"] + h_t @ p["W_hc_hat"] + p["b_c_hat"])
    o_t = jax.nn.sigmoid(x2d @ p["W_xo"] + h_t @ p["W_ho"] + p["b_o"])
    c_new = f_t * c_t + i_t * c_hat
    h_new = o_t * jnp.tanh(c_new)
    return h_new, c_new


if __name__ == "__main__":
    bs, num_nodes, feature_dim, hidden_size = 2, 16, 8, 32
    M = bs * num_nodes

    key = jax.random.PRNGKey(0)
    k_x, k_h, k_c, k_p = jax.random.split(key, 4)

    x = jax.random.normal(k_x, (bs, num_nodes, feature_dim), jnp.float32)
    h0 = jax.random.normal(k_h, (M, hidden_size), jnp.float32)
    c0 = jax.random.normal(k_c, (M, hidden_size), jnp.float32)
    params = init_lstm_params(k_p, feature_dim, hidden_size)

    h_ref, c_ref = lstm_cell_ref(x, h0, c0, params)

    # f32 path (exact tolerance).
    W_f32, b_f32 = prepare_fused_weights(params, feature_dim, hidden_size,
                                         compute_dtype=jnp.float32)
    h_out, c_out = lstm_cell_pallas(x, h0, c0, W_f32, b_f32,
                                    hidden=hidden_size)
    jax.block_until_ready((h_out, c_out))
    assert jnp.allclose(h_out, h_ref, atol=1e-4, rtol=1e-4)
    assert jnp.allclose(c_out, c_ref, atol=1e-4, rtol=1e-4)

    # bf16 MXU fast path (v6e/v7x): matmul operands in bf16, f32 accumulation
    # and f32 elementwise epilogue.
    W_bf16, b_bf16 = prepare_fused_weights(params, feature_dim, hidden_size,
                                           compute_dtype=jnp.bfloat16)
    h_bf, c_bf = lstm_cell_pallas(x, h0, c0, W_bf16, b_bf16,
                                  hidden=hidden_size)
    jax.block_until_ready((h_bf, c_bf))
    assert jnp.allclose(h_bf, h_ref, atol=5e-2, rtol=5e-2)
    assert jnp.allclose(c_bf, c_ref, atol=5e-2, rtol=5e-2)

    print("KERNEL_OK")
</pallas_src>

<mosaic_0001>
module attributes {stable_mosaic.version = 11 : i64} {
  func.func @_lstm_cell_kernel(%arg0: i32, %arg1: memref<32x136xf32, #tpu.memory_space<vmem>>, %arg2: memref<32x128xf32, #tpu.memory_space<vmem>>, %arg3: memref<136x512xf32, #tpu.memory_space<vmem>>, %arg4: memref<1x512xf32, #tpu.memory_space<vmem>>, %arg5: memref<32x128xf32, #tpu.memory_space<vmem>>, %arg6: memref<32x128xf32, #tpu.memory_space<vmem>>) attributes {dimension_semantics = [#tpu.dimension_semantics<parallel>], iteration_bounds = array<i64: 1>, scalar_prefetch = 0 : i64, scratch_operands = 0 : i64, tpu.core_type = #tpu.core_type<tc>, window_params = [{transform_indices = @transform_0, window_bounds = array<i64: 32, 136>}, {transform_indices = @transform_1, window_bounds = array<i64: 32, 128>}, {pipeline_mode = #tpu.pipeline_mode<synchronous>, transform_indices = @transform_2, window_bounds = array<i64: 136, 512>}, {pipeline_mode = #tpu.pipeline_mode<synchronous>, transform_indices = @transform_3, window_bounds = array<i64: 1, 512>}, {transform_indices = @transform_4, window_bounds = array<i64: 32, 128>}, {transform_indices = @transform_5, window_bounds = array<i64: 32, 128>}]} {
    %c0 = arith.constant 0 : index
    %c0_0 = arith.constant 0 : index
    %0 = vector.load %arg1[%c0, %c0_0] : memref<32x136xf32, #tpu.memory_space<vmem>>, vector<32x136xf32>
    %c0_1 = arith.constant 0 : index
    %c0_2 = arith.constant 0 : index
    %1 = vector.load %arg3[%c0_1, %c0_2] : memref<136x512xf32, #tpu.memory_space<vmem>>, vector<136x512xf32>
    %cst = arith.constant dense<0.000000e+00> : vector<32x512xf32>
    %2 = tpu.matmul %0, %1, %cst {dimension_numbers = #tpu.dot_dimension_numbers<[1], [0], [0], [1], [0, 0, 1, 1], [], []>} : vector<32x136xf32>, vector<136x512xf32>, vector<32x512xf32> -> vector<32x512xf32>
    %c0_3 = arith.constant 0 : index
    %c0_4 = arith.constant 0 : index
    %3 = vector.load %arg4[%c0_3, %c0_4] : memref<1x512xf32, #tpu.memory_space<vmem>>, vector<1x512xf32>
    %4 = vector.broadcast %3 : vector<1x512xf32> to vector<32x512xf32>
    %5 = arith.addf %2, %4 : vector<32x512xf32>
    %6 = vector.extract_strided_slice %5 {offsets = [0, 0], sizes = [32, 128], strides = [1, 1]} : vector<32x512xf32> to vector<32x128xf32>
    %7 = arith.negf %6 : vector<32x128xf32>
    %8 = math.exp %7 : vector<32x128xf32>
    %cst_5 = arith.constant 1.000000e+00 : f32
    %9 = vector.broadcast %cst_5 : f32 to vector<32x128xf32>
    %10 = arith.addf %9, %8 : vector<32x128xf32>
    %11 = arith.divf %9, %10 : vector<32x128xf32>
    %12 = vector.extract_strided_slice %5 {offsets = [0, 128], sizes = [32, 128], strides = [1, 1]} : vector<32x512xf32> to vector<32x128xf32>
    %13 = arith.negf %12 : vector<32x128xf32>
    %14 = math.exp %13 : vector<32x128xf32>
    %cst_6 = arith.constant 1.000000e+00 : f32
    %15 = vector.broadcast %cst_6 : f32 to vector<32x128xf32>
    %16 = arith.addf %15, %14 : vector<32x128xf32>
    %17 = arith.divf %15, %16 : vector<32x128xf32>
    %18 = vector.extract_strided_slice %5 {offsets = [0, 256], sizes = [32, 128], strides = [1, 1]} : vector<32x512xf32> to vector<32x128xf32>
    %19 = math.tanh %18 : vector<32x128xf32>
    %20 = vector.extract_strided_slice %5 {offsets = [0, 384], sizes = [32, 128], strides = [1, 1]} : vector<32x512xf32> to vector<32x128xf32>
    %21 = arith.negf %20 : vector<32x128xf32>
    %22 = math.exp %21 : vector<32x128xf32>
    %cst_7 = arith.constant 1.000000e+00 : f32
    %23 = vector.broadcast %cst_7 : f32 to vector<32x128xf32>
    %24 = arith.addf %23, %22 : vector<32x128xf32>
    %25 = arith.divf %23, %24 : vector<32x128xf32>
    %c0_8 = arith.constant 0 : index
    %c0_9 = arith.constant 0 : index
    %26 = vector.load %arg2[%c0_8, %c0_9] : memref<32x128xf32, #tpu.memory_space<vmem>>, vector<32x128xf32>
    %27 = arith.mulf %17, %26 : vector<32x128xf32>
    %28 = arith.mulf %11, %19 : vector<32x128xf32>
    %29 = arith.addf %27, %28 : vector<32x128xf32>
    %30 = math.tanh %29 : vector<32x128xf32>
    %31 = arith.mulf %25, %30 : vector<32x128xf32>
    %c0_10 = arith.constant 0 : index
    %c0_11 = arith.constant 0 : index
    %32 = vector.load %arg6[%c0_10, %c0_11] : memref<32x128xf32, #tpu.memory_space<vmem>>, vector<32x128xf32>
    tpu.vector_store %arg6[%c0_10, %c0_11], %29 {strides = array<i32>} : memref<32x128xf32, #tpu.memory_space<vmem>>, vector<32x128xf32>,
    %c0_12 = arith.constant 0 : index
    %c0_13 = arith.constant 0 : index
    %33 = vector.load %arg5[%c0_12, %c0_13] : memref<32x128xf32, #tpu.memory_space<vmem>>, vector<32x128xf32>
    tpu.vector_store %arg5[%c0_12, %c0_13], %31 {strides = array<i32>} : memref<32x128xf32, #tpu.memory_space<vmem>>, vector<32x128xf32>,
    return
  }
  func.func @transform_0(%arg0: i32) -> (i32, i32) {
    %c0_i32 = arith.constant 0 : i32
    %c0_i32_0 = arith.constant 0 : i32
    return %arg0, %c0_i32 : i32, i32
  }
  func.func @transform_1(%arg0: i32) -> (i32, i32) {
    %c0_i32 = arith.constant 0 : i32
    %c0_i32_0 = arith.constant 0 : i32
    return %arg0, %c0_i32 : i32, i32
  }
  func.func @transform_2(%arg0: i32) -> (i32, i32) {
    %c0_i32 = arith.constant 0 : i32
    %c0_i32_0 = arith.constant 0 : i32
    %c0_i32_1 = arith.constant 0 : i32
    return %c0_i32, %c0_i32_0 : i32, i32
  }
  func.func @transform_3(%arg0: i32) -> (i32, i32) {
    %c0_i32 = arith.constant 0 : i32
    %c0_i32_0 = arith.constant 0 : i32
    %c0_i32_1 = arith.constant 0 : i32
    return %c0_i32, %c0_i32_0 : i32, i32
  }
  func.func @transform_4(%arg0: i32) -> (i32, i32) {
    %c0_i32 = arith.constant 0 : i32
    %c0_i32_0 = arith.constant 0 : i32
    return %arg0, %c0_i32 : i32, i32
  }
  func.func @transform_5(%arg0: i32) -> (i32, i32) {
    %c0_i32 = arith.constant 0 : i32
    %c0_i32_0 = arith.constant 0 : i32
    return %arg0, %c0_i32 : i32, i32
  }
}

</mosaic_0001>

<llo_original>
// kernel: lstm_cell_pallas.1
$region0: #{lstm_cell_pallas.1}
  #allocation0 [shape = 'u32[]', space=smem, size = 0x4, offset = 0x4, fixed_abs, tag = 'smem constant byte address 0x4 - core index']
  #allocation1 [shape = 'u32[144,128]{1,0:T(1,128)}', space=vmem, size = 0x12000, scoped, tag = 'internal scratch']
  %s0 = inlined_call_operand.vmem [shape: f32[32,136], index: 0, kind: input, shape index: {}]
  %s1 = inlined_call_operand.vmem [shape: f32[32,128], index: 1, kind: input, shape index: {}]
  %s2 = inlined_call_operand.hbm [shape: f32[136,512], index: 2, kind: input, shape index: {}]
  %s3 = inlined_call_operand.vmem [shape: f32[1,512], index: 3, kind: input, shape index: {}]
  %s4 = inlined_call_operand.hbm [shape: f32[32,128], index: 4, kind: output, shape index: {0}]
  %s5 = inlined_call_operand.hbm [shape: f32[32,128], index: 5, kind: output, shape index: {1}]
  %6 = xla_tuple %s4, %s5
  %s7 = sld [smem:[#allocation0]]
  $region38: #{lstm_cell_pallas.1} parent=0
    _
  %s9 = ssub.s32 1, %s7
  %s10 = scalar_select 0, %s9, %s7
  $region1: #{lstm_cell_pallas.1} parent=0
    #allocation2 [shape = 'u8[278528]{0}', space=vmem, size = 0x44000, scoped, tag = 'input window, operand 2, single buffered']
    #allocation3 [shape = 's32[1]{0}', space=sflag, size = 0x4, scoped, tag = 'scoped memory for lstm_cell_pallas.1']
    #allocation4 [shape = 's32[1]{0}', space=sflag, size = 0x4, scoped, tag = 'scoped memory for lstm_cell_pallas.1']
    #allocation5 [shape = 'u8[16384]{0}', space=vmem, size = 0x4000, scoped, tag = 'output window, operand 0, single buffered']
    #allocation6 [shape = 'u8[16384]{0}', space=vmem, size = 0x4000, scoped, tag = 'output window, operand 1, single buffered']
    #allocation7 [shape = 's32[1]{0}', space=sflag, size = 0x4, scoped, tag = 'scoped memory for lstm_cell_pallas.1']
    %11 = vsyncpa [#allocation3], 0
    %12 = vsyncpa [#allocation4], 0
    %13 = vsyncpa [#allocation7], 0
    // Predicated region
    $region2: #{lstm_cell_pallas.1} parent=1 // pred_check
      _
    $region3: #{lstm_cell_pallas.1} parent=1 // pred_check_branch
      %15 = sbr.rel (0) target = $region5
    $region4: #{lstm_cell_pallas.1} parent=1 // pred_region
      _
    $region5: #{lstm_cell_pallas.1} parent=1 // pred_fallthru
      _
    // Predicated region
    $region6: #{lstm_cell_pallas.1} parent=1 // pred_check
      _
    $region7: #{lstm_cell_pallas.1} parent=1 // pred_check_branch
      %17 = sbr.rel (0) target = $region9
    $region8: #{lstm_cell_pallas.1} parent=1 // pred_region
      _
    $region9: #{lstm_cell_pallas.1} parent=1 // pred_fallthru
      _
    // Predicated region
    $region10: #{lstm_cell_pallas.1} parent=1 // pred_check
      _
    $region11: #{lstm_cell_pallas.1} parent=1 // pred_check_branch
      %19 = sbr.rel (0) target = $region13
    $region12: #{lstm_cell_pallas.1} parent=1 // pred_region
      %s21 = ssub.s32 8704, 8704
      %22 = vsyncadd [#allocation3], %s21
      %s23 = sshll.u32 [#allocation2], 4
      %s24 = int_to_ptr.vmem [resolvable:$true] %s23
      %29 = dma.hbm_to_vmem [thread:$0]  %s2, 8704, %s24, [#allocation3], 512, 512, 32
    $region13: #{lstm_cell_pallas.1} parent=1 // pred_fallthru
      _
    // Predicated region
    $region14: #{lstm_cell_pallas.1} parent=1 // pred_check
      _
    $region15: #{lstm_cell_pallas.1} parent=1 // pred_check_branch
      %31 = sbr.rel (0) target = $region17
    $region16: #{lstm_cell_pallas.1} parent=1 // pred_region
      _
    $region17: #{lstm_cell_pallas.1} parent=1 // pred_fallthru
      _
    // Predicated region
    $region18: #{lstm_cell_pallas.1} parent=1 // pred_check
      _
    $region19: #{lstm_cell_pallas.1} parent=1 // pred_check_branch
      %33 = sbr.rel (0) target = $region21
    $region20: #{lstm_cell_pallas.1} parent=1 // pred_region
      %34 = dma.done [#allocation3], 8704
    $region21: #{lstm_cell_pallas.1} parent=1 // pred_fallthru
      _
    %v35 = vld [vmem:[%s0] sm:$0xff]
    %v36 = vld [vmem:[%s0 + $0x8] sm:$0xff]
    %v37 = vld [vmem:[%s0 + $0x10] sm:$0xff]
    %v38 = vld [vmem:[%s0 + $0x18] sm:$0xff]
    %v39 = vld [vmem:[%s0 + $0x20] sm:$0xff]
    %v40 = vld [vmem:[%s0 + $0x28] sm:$0xff]
    %v41 = vld [vmem:[%s0 + $0x30] sm:$0xff]
    %v42 = vld [vmem:[%s0 + $0x38] sm:$0xff]
    %v43 = vld [vmem:[#allocation2] sm:$0xff]
    %v44 = vld [vmem:[#allocation2 + $0x8] sm:$0xff]
    %v45 = vld [vmem:[#allocation2 + $0x10] sm:$0xff]
    %v46 = vld [vmem:[#allocation2 + $0x18] sm:$0xff]
    %v47 = vld [vmem:[#allocation2 + $0x20] sm:$0xff]
    %v48 = vld [vmem:[#allocation2 + $0x28] sm:$0xff]
    %v49 = vld [vmem:[#allocation2 + $0x30] sm:$0xff]
    %v50 = vld [vmem:[#allocation2 + $0x38] sm:$0xff]
    %v51 = vld [vmem:[#allocation2 + $0x40] sm:$0xff]
    %v52 = vld [vmem:[#allocation2 + $0x48] sm:$0xff]
    %v53 = vld [vmem:[#allocation2 + $0x50] sm:$0xff]
    %v54 = vld [vmem:[#allocation2 + $0x58] sm:$0xff]
    %v55 = vld [vmem:[#allocation2 + $0x60] sm:$0xff]
    %v56 = vld [vmem:[#allocation2 + $0x68] sm:$0xff]
    %v57 = vld [vmem:[#allocation2 + $0x70] sm:$0xff]
    %v58 = vld [vmem:[#allocation2 + $0x78] sm:$0xff]
    %v59 = vld [vmem:[#allocation2 + $0x80] sm:$0xff]
    %v60 = vld [vmem:[#allocation2 + $0x88] sm:$0xff]
    %v61 = vld [vmem:[#allocation2 + $0x90] sm:$0xff]
    %v62 = vld [vmem:[#allocation2 + $0x98] sm:$0xff]
    %v63 = vld [vmem:[#allocation2 + $0xa0] sm:$0xff]
    %v64 = vld [vmem:[#allocation2 + $0xa8] sm:$0xff]
    %v65 = vld [vmem:[#allocation2 + $0xb0] sm:$0xff]
    %v66 = vld [vmem:[#allocation2 + $0xb8] sm:$0xff]
    %v67 = vld [vmem:[#allocation2 + $0xc0] sm:$0xff]
    %v68 = vld [vmem:[#allocation2 + $0xc8] sm:$0xff]
    %v69 = vld [vmem:[#allocation2 + $0xd0] sm:$0xff]
    %v70 = vld [vmem:[#allocation2 + $0xd8] sm:$0xff]
    %v71 = vld [vmem:[#allocation2 + $0xe0] sm:$0xff]
    %v72 = vld [vmem:[#allocation2 + $0xe8] sm:$0xff]
    %v73 = vld [vmem:[#allocation2 + $0xf0] sm:$0xff]
    %v74 = vld [vmem:[#allocation2 + $0xf8] sm:$0xff]
    %v75 = vld [vmem:[#allocation2 + $0x100] sm:$0xff]
    %v76 = vld [vmem:[#allocation2 + $0x108] sm:$0xff]
    %v77 = vld [vmem:[#allocation2 + $0x110] sm:$0xff]
    %v78 = vld [vmem:[#allocation2 + $0x118] sm:$0xff]
    %v79 = vld [vmem:[#allocation2 + $0x120] sm:$0xff]
    %v80 = vld [vmem:[#allocation2 + $0x128] sm:$0xff]
    %v81 = vld [vmem:[#allocation2 + $0x130] sm:$0xff]
    %v82 = vld [vmem:[#allocation2 + $0x138] sm:$0xff]
    %v83 = vld [vmem:[#allocation2 + $0x140] sm:$0xff]
    %v84 = vld [vmem:[#allocation2 + $0x148] sm:$0xff]
    %v85 = vld [vmem:[#allocation2 + $0x150] sm:$0xff]
    %v86 = vld [vmem:[#allocation2 + $0x158] sm:$0xff]
    %v87 = vld [vmem:[#allocation2 + $0x160] sm:$0xff]
    %v88 = vld [vmem:[#allocation2 + $0x168] sm:$0xff]
    %v89 = vld [vmem:[#allocation2 + $0x170] sm:$0xff]
    %v90 = vld [vmem:[#allocation2 + $0x178] sm:$0xff]
    %v91 = vld [vmem:[#allocation2 + $0x180] sm:$0xff]
    %v92 = vld [vmem:[#allocation2 + $0x188] sm:$0xff]
    %v93 = vld [vmem:[#allocation2 + $0x190] sm:$0xff]
    %v94 = vld [vmem:[#allocation2 + $0x198] sm:$0xff]
    %v95 = vld [vmem:[#allocation2 + $0x1a0] sm:$0xff]
    %v96 = vld [vmem:[#allocation2 + $0x1a8] sm:$0xff]
    %v97 = vld [vmem:[#allocation2 + $0x1b0] sm:$0xff]
    %v98 = vld [vmem:[#allocation2 + $0x1b8] sm:$0xff]
    %v99 = vld [vmem:[#allocation2 + $0x1c0] sm:$0xff]
    %v100 = vld [vmem:[#allocation2 + $0x1c8] sm:$0xff]
    %v101 = vld [vmem:[#allocation2 + $0x1d0] sm:$0xff]
    %v102 = vld [vmem:[#allocation2 + $0x1d8] sm:$0xff]
    %v103 = vld [vmem:[#allocation2 + $0x1e0] sm:$0xff]
    %v104 = vld [vmem:[#allocation2 + $0x1e8] sm:$0xff]
    %v105 = vld [vmem:[#allocation2 + $0x1f0] sm:$0xff]
    %v106 = vld [vmem:[#allocation2 + $0x1f8] sm:$0xff]
    %v107 = vld [vmem:[#allocation2 + $0x200] sm:$0xff]
    %v108 = vld [vmem:[#allocation2 + $0x208] sm:$0xff]
    %v109 = vld [vmem:[#allocation2 + $0x210] sm:$0xff]
    %v110 = vld [vmem:[#allocation2 + $0x218] sm:$0xff]
    %v111 = vld [vmem:[%s3] sm:$0xf]
    %v113 = vlaneseq
    %v114 = vshrl.u32 %v113, 7
    %v115 = vsub.s32 0, %v114
    %v116 = vrot.slane %v111, %v115
    %v117 = vlaneseq
    %v118 = vshrl.u32 %v117, 7
    %v119 = vsub.s32 1, %v118
    %v120 = vrot.slane %v111, %v119
    %v121 = vlaneseq
    %v122 = vshrl.u32 %v121, 7
    %v123 = vsub.s32 2, %v122
    %v124 = vrot.slane %v111, %v123
    %v125 = vlaneseq
    %v126 = vshrl.u32 %v125, 7
    %v127 = vsub.s32 3, %v126
    %v128 = vrot.slane %v111, %v127
    %vm133 = vcmask 64512
    %v135 = vsel %vm133, %v36, 0
    %v138 = vsel %vm133, %v38, 0
    %v141 = vsel %vm133, %v40, 0
    %v144 = vsel %vm133, %v42, 0
    %146 = vmatprep.subr.mxu0 %v44
    %147 = vmatpush1.msra.mxu0 %v43
    %148 = vmatprep.subr.mxu0 %v48
    %149 = vmatpush1.msra.mxu0 %v47
    %150 = vmatprep.subr.mxu0 %v52
    %151 = vmatpush1.msra.mxu0 %v51
    %152 = vmatprep.subr.mxu0 %v56
    %153 = vmatpush1.msra.mxu0 %v55
    %154 = vmatprep.subr.mxu0 %v60
    %155 = vmatpush1.msra.mxu0 %v59
    %156 = vmatprep.subr.mxu0 %v64
    %157 = vmatpush1.msra.mxu0 %v63
    %158 = vmatprep.subr.mxu0 %v68
    %159 = vmatpush1.msra.mxu0 %v67
    %160 = vmatprep.subr.mxu0 %v72
    %161 = vmatpush1.msra.mxu0 %v71
    %162 = vmatprep.subr.mxu0 %v76
    %163 = vmatpush1.msra.mxu0 %v75
    %164 = vmatprep.subr.mxu0 %v80
    %165 = vmatpush1.msra.mxu0 %v79
    %166 = vmatprep.subr.mxu0 %v84
    %167 = vmatpush1.msra.mxu0 %v83
    %168 = vmatprep.subr.mxu0 %v88
    %169 = vmatpush1.msra.mxu0 %v87
    %170 = vmatprep.subr.mxu0 %v92
    %171 = vmatpush1.msra.mxu0 %v91
    %172 = vmatprep.subr.mxu0 %v96
    %173 = vmatpush1.msra.mxu0 %v95
    %174 = vmatprep.subr.mxu0 %v100
    %175 = vmatpush1.msra.mxu0 %v99
    %176 = vmatprep.subr.mxu0 %v104
    %177 = vmatpush1.msra.mxu0 %v103
    %178 = vmatprep.subr.mxu0 %v108
    %179 = vmatpush1.msra.mxu0 %v107
    %180 = vmatprep.subr.mxu0 0.0
    %181 = vmatpush1.msra.mxu0 0.0
    %182 = vmatprep.subr.mxu0 0.0
    %183 = vmatpush1.msra.mxu0 0.0
    %184 = vmatprep.subr.mxu0 0.0
    %185 = vmatpush1.msra.mxu0 0.0
    %186 = vmatprep.subr.mxu0 0.0
    %187 = vmatpush1.msra.mxu0 0.0
    %188 = vmatprep.subr.mxu0 0.0
    %189 = vmatpush1.msra.mxu0 0.0
    %190 = vmatprep.subr.mxu0 0.0
    %191 = vmatpush1.msra.mxu0 0.0
    %192 = vmatprep.subr.mxu0 0.0
    %193 = vmatpush1.msra.mxu0 0.0
    %194 = vmatprep.subr.mxu0 0.0
    %195 = vmatpush1.msra.mxu0 0.0
    %196 = vmatprep.subr.mxu0 0.0
    %197 = vmatpush1.msra.mxu0 0.0
    %198 = vmatprep.subr.mxu0 0.0
    %199 = vmatpush1.msra.mxu0 0.0
    %200 = vmatprep.subr.mxu0 0.0
    %201 = vmatpush1.msra.mxu0 0.0
    %202 = vmatprep.subr.mxu0 0.0
    %203 = vmatpush1.msra.mxu0 0.0
    %204 = vmatprep.subr.mxu0 0.0
    %205 = vmatpush1.msra.mxu0 0.0
    %206 = vmatprep.subr.mxu0 0.0
    %207 = vmatpush1.msra.mxu0 0.0
    %208 = vmatprep.subr.mxu0 0.0
    %209 = vmatpush1.msra.mxu0 0.0
    %210 = vmatprep.mubr.f32.mxu0 %v135
    %211 = vmatmul.mubr.f32.gmra.mrb[0].mxu0 %v35
    %v212 = vpop.f32.mrb[0].mxu0
    %v213 = vadd.f32 %v116, %v212
    %v214 = vpop.f32.mrb[0].mxu0
    %v215 = vadd.f32 %v120, %v214
    %216 = vmatprep.mubr.f32.mxu0 %v138
    %217 = vmatmul.mubr.f32.gmra.mrb[0].mxu0 %v37
    %v218 = vpop.f32.mrb[0].mxu0
    %v219 = vadd.f32 %v116, %v218
    %v220 = vpop.f32.mrb[0].mxu0
    %v221 = vadd.f32 %v120, %v220
    %222 = vmatprep.mubr.f32.mxu0 %v141
    %223 = vmatmul.mubr.f32.gmra.mrb[0].mxu0 %v39
    %v224 = vpop.f32.mrb[0].mxu0
    %v225 = vadd.f32 %v116, %v224
    %v226 = vpop.f32.mrb[0].mxu0
    %v227 = vadd.f32 %v120, %v226
    %228 = vmatprep.mubr.f32.mxu0 %v144
    %229 = vmatmul.mubr.f32.gmra.mrb[0].mxu0 %v41
    %v230 = vpop.f32.mrb[0].mxu0
    %v231 = vadd.f32 %v116, %v230
    %v232 = vpop.f32.mrb[0].mxu0
    %v233 = vadd.f32 %v120, %v232
    %234 = vdwg.mxu0
    %235 = vmatprep.subr.mxu0 %v46
    %236 = vmatpush1.msra.mxu0 %v45
    %237 = vmatprep.subr.mxu0 %v50
    %238 = vmatpush1.msra.mxu0 %v49
    %239 = vmatprep.subr.mxu0 %v54
    %240 = vmatpush1.msra.mxu0 %v53
    %241 = vmatprep.subr.mxu0 %v58
    %242 = vmatpush1.msra.mxu0 %v57
    %243 = vmatprep.subr.mxu0 %v62
    %244 = vmatpush1.msra.mxu0 %v61
    %245 = vmatprep.subr.mxu0 %v66
    %246 = vmatpush1.msra.mxu0 %v65
    %247 = vmatprep.subr.mxu0 %v70
    %248 = vmatpush1.msra.mxu0 %v69
    %249 = vmatprep.subr.mxu0 %v74
    %250 = vmatpush1.msra.mxu0 %v73
    %251 = vmatprep.subr.mxu0 %v78
    %252 = vmatpush1.msra.mxu0 %v77
    %253 = vmatprep.subr.mxu0 %v82
    %254 = vmatpush1.msra.mxu0 %v81
    %255 = vmatprep.subr.mxu0 %v86
    %256 = vmatpush1.msra.mxu0 %v85
    %257 = vmatprep.subr.mxu0 %v90
    %258 = vmatpush1.msra.mxu0 %v89
    %259 = vmatprep.subr.mxu0 %v94
    %260 = vmatpush1.msra.mxu0 %v93
    %261 = vmatprep.subr.mxu0 %v98
    %262 = vmatpush1.msra.mxu0 %v97
    %263 = vmatprep.subr.mxu0 %v102
    %264 = vmatpush1.msra.mxu0 %v101
    %265 = vmatprep.subr.mxu0 %v106
    %266 = vmatpush1.msra.mxu0 %v105
    %267 = vmatprep.subr.mxu0 %v110
    %268 = vmatpush1.msra.mxu0 %v109
    %269 = vmatprep.subr.mxu0 0.0
    %270 = vmatpush1.msra.mxu0 0.0
    %271 = vmatprep.subr.mxu0 0.0
    %272 = vmatpush1.msra.mxu0 0.0
    %273 = vmatprep.subr.mxu0 0.0
    %274 = vmatpush1.msra.mxu0 0.0
    %275 = vmatprep.subr.mxu0 0.0
    %276 = vmatpush1.msra.mxu0 0.0
    %277 = vmatprep.subr.mxu0 0.0
    %278 = vmatpush1.msra.mxu0 0.0
    %279 = vmatprep.subr.mxu0 0.0
    %280 = vmatpush1.msra.mxu0 0.0
    %281 = vmatprep.subr.mxu0 0.0
    %282 = vmatpush1.msra.mxu0 0.0
    %283 = vmatprep.subr.mxu0 0.0
    %284 = vmatpush1.msra.mxu0 0.0
    %285 = vmatprep.subr.mxu0 0.0
    %286 = vmatpush1.msra.mxu0 0.0
    %287 = vmatprep.subr.mxu0 0.0
    %288 = vmatpush1.msra.mxu0 0.0
    %289 = vmatprep.subr.mxu0 0.0
    %290 = vmatpush1.msra.mxu0 0.0
    %291 = vmatprep.subr.mxu0 0.0
    %292 = vmatpush1.msra.mxu0 0.0
    %293 = vmatprep.subr.mxu0 0.0
    %294 = vmatpush1.msra.mxu0 0.0
    %295 = vmatprep.subr.mxu0 0.0
    %296 = vmatpush1.msra.mxu0 0.0
    %297 = vmatprep.subr.mxu0 0.0
    %298 = vmatpush1.msra.mxu0 0.0
    %299 = vmatprep.mubr.f32.mxu0 %v135
    %300 = vmatmul.mubr.f32.gmra.mrb[0].mxu0 %v35
    %v301 = vpop.f32.mrb[0].mxu0
    %v302 = vadd.f32 %v124, %v301
    %v303 = vpop.f32.mrb[0].mxu0
    %v304 = vadd.f32 %v128, %v303
    %305 = vmatprep.mubr.f32.mxu0 %v138
    %306 = vmatmul.mubr.f32.gmra.mrb[0].mxu0 %v37
    %v307 = vpop.f32.mrb[0].mxu0
    %v308 = vadd.f32 %v124, %v307
    %v309 = vpop.f32.mrb[0].mxu0
    %v310 = vadd.f32 %v128, %v309
    %311 = vmatprep.mubr.f32.mxu0 %v141
    %312 = vmatmul.mubr.f32.gmra.mrb[0].mxu0 %v39
    %v313 = vpop.f32.mrb[0].mxu0
    %v314 = vadd.f32 %v124, %v313
    %v315 = vpop.f32.mrb[0].mxu0
    %v316 = vadd.f32 %v128, %v315
    %317 = vmatprep.mubr.f32.mxu0 %v144
    %318 = vmatmul.mubr.f32.gmra.mrb[0].mxu0 %v41
    %v319 = vpop.f32.mrb[0].mxu0
    %v320 = vadd.f32 %v124, %v319
    %v321 = vpop.f32.mrb[0].mxu0
    %v322 = vadd.f32 %v128, %v321
    %323 = vdwg.mxu0
    %v324 = vxor.u32 %v213, 2147483648
    %v325 = vxor.u32 %v219, 2147483648
    %v326 = vxor.u32 %v225, 2147483648
    %v327 = vxor.u32 %v231, 2147483648
    %v328 = vmul.f32 %v324, 1.442695
    %v329 = vpow.pop %v328
    %v330 = vmul.f32 %v325, 1.442695
    %v331 = vpow.pop %v330
    %v332 = vmul.f32 %v326, 1.442695
    %v333 = vpow.pop %v332
    %v334 = vmul.f32 %v327, 1.442695
    %v335 = vpow.pop %v334
    %v336 = vadd.f32 %v329, 1.0
    %v337 = vadd.f32 %v331, 1.0
    %v338 = vadd.f32 %v333, 1.0
    %v339 = vadd.f32 %v335, 1.0
    %v340 = vrcp.pop %v336
    %v341 = vmul.f32 1.0, %v340
    %v342 = vrcp.pop %v337
    %v343 = vmul.f32 1.0, %v342
    %v344 = vrcp.pop %v338
    %v345 = vmul.f32 1.0, %v344
    %v346 = vrcp.pop %v339
    %v347 = vmul.f32 1.0, %v346
    %v348 = vxor.u32 %v215, 2147483648
    %v349 = vxor.u32 %v221, 2147483648
    %v350 = vxor.u32 %v227, 2147483648
    %v351 = vxor.u32 %v233, 2147483648
    %v352 = vmul.f32 %v348, 1.442695
    %v353 = vpow.pop %v352
    %v354 = vmul.f32 %v349, 1.442695
    %v355 = vpow.pop %v354
    %v356 = vmul.f32 %v350, 1.442695
    %v357 = vpow.pop %v356
    %v358 = vmul.f32 %v351, 1.442695
    %v359 = vpow.pop %v358
    %v360 = vadd.f32 %v353, 1.0
    %v361 = vadd.f32 %v355, 1.0
    %v362 = vadd.f32 %v357, 1.0
    %v363 = vadd.f32 %v359, 1.0
    %v364 = vrcp.pop %v360
    %v365 = vmul.f32 1.0, %v364
    %v366 = vrcp.pop %v361
    %v367 = vmul.f32 1.0, %v366
    %v368 = vrcp.pop %v362
    %v369 = vmul.f32 1.0, %v368
    %v370 = vrcp.pop %v363
    %v371 = vmul.f32 1.0, %v370
    %v372 = vtanh.pop %v302
    %v373 = vtanh.pop %v308
    %v374 = vtanh.pop %v314
    %v375 = vtanh.pop %v320
    %v376 = vxor.u32 %v304, 2147483648
    %v377 = vxor.u32 %v310, 2147483648
    %v378 = vxor.u32 %v316, 2147483648
    %v379 = vxor.u32 %v322, 2147483648
    %v380 = vmul.f32 %v376, 1.442695
    %v381 = vpow.pop %v380
    %v382 = vmul.f32 %v377, 1.442695
    %v383 = vpow.pop %v382
    %v384 = vmul.f32 %v378, 1.442695
    %v385 = vpow.pop %v384
    %v386 = vmul.f32 %v379, 1.442695
    %v387 = vpow.pop %v386
    %v388 = vadd.f32 %v381, 1.0
    %v389 = vadd.f32 %v383, 1.0
    %v390 = vadd.f32 %v385, 1.0
    %v391 = vadd.f32 %v387, 1.0
    %v392 = vrcp.pop %v388
    %v393 = vmul.f32 1.0, %v392
    %v394 = vrcp.pop %v389
    %v395 = vmul.f32 1.0, %v394
    %v396 = vrcp.pop %v390
    %v397 = vmul.f32 1.0, %v396
    %v398 = vrcp.pop %v391
    %v399 = vmul.f32 1.0, %v398
    %v400 = vld [vmem:[%s1] sm:$0xff]
    %v401 = vld [vmem:[%s1 + $0x8] sm:$0xff]
    %v402 = vld [vmem:[%s1 + $0x10] sm:$0xff]
    %v403 = vld [vmem:[%s1 + $0x18] sm:$0xff]
    %v404 = vmul.f32 %v365, %v400
    %v405 = vmul.f32 %v367, %v401
    %v406 = vmul.f32 %v369, %v402
    %v407 = vmul.f32 %v371, %v403
    %v408 = vmul.f32 %v341, %v372
    %v409 = vmul.f32 %v343, %v373
    %v410 = vmul.f32 %v345, %v374
    %v411 = vmul.f32 %v347, %v375
    %v412 = vadd.f32 %v404, %v408
    %v413 = vadd.f32 %v405, %v409
    %v414 = vadd.f32 %v406, %v410
    %v415 = vadd.f32 %v407, %v411
    %v416 = vtanh.pop %v412
    %v417 = vtanh.pop %v413
    %v418 = vtanh.pop %v414
    %v419 = vtanh.pop %v415
    %v420 = vmul.f32 %v393, %v416
    %v421 = vmul.f32 %v395, %v417
    %v422 = vmul.f32 %v397, %v418
    %v423 = vmul.f32 %v399, %v419
    %424 = vst [vmem:[#allocation6] sm:$0xff] %v412
    %425 = vst [vmem:[#allocation6 + $0x8] sm:$0xff] %v413
    %426 = vst [vmem:[#allocation6 + $0x10] sm:$0xff] %v414
    %427 = vst [vmem:[#allocation6 + $0x18] sm:$0xff] %v415
    %428 = vst [vmem:[#allocation5] sm:$0xff] %v420
    %429 = vst [vmem:[#allocation5 + $0x8] sm:$0xff] %v421
    %430 = vst [vmem:[#allocation5 + $0x10] sm:$0xff] %v422
    %431 = vst [vmem:[#allocation5 + $0x18] sm:$0xff] %v423
    // Predicated region
    $region22: #{lstm_cell_pallas.1} parent=1 // pred_check
      _
    $region23: #{lstm_cell_pallas.1} parent=1 // pred_check_branch
      %433 = sbr.rel (0) target = $region25
    $region24: #{lstm_cell_pallas.1} parent=1 // pred_region
      %s435 = ssub.s32 512, 512
      %436 = vsyncadd [#allocation4], %s435
      %s437 = sshll.u32 [#allocation5], 4
      %s438 = int_to_ptr.vmem [resolvable:$true] %s437
      %443 = dma.vmem_to_hbm [thread:$0]  %s438, 512, %s4, [#allocation4], 128, 128, 8
    $region25: #{lstm_cell_pallas.1} parent=1 // pred_fallthru
      _
    // Predicated region
    $region26: #{lstm_cell_pallas.1} parent=1 // pred_check
      _
    $region27: #{lstm_cell_pallas.1} parent=1 // pred_check_branch
      %445 = sbr.rel (0) target = $region29
    $region28: #{lstm_cell_pallas.1} parent=1 // pred_region
      %s447 = ssub.s32 512, 512
      %448 = vsyncadd [#allocation7], %s447
      %s449 = sshll.u32 [#allocation6], 4
      %s450 = int_to_ptr.vmem [resolvable:$true] %s449
      %455 = dma.vmem_to_hbm [thread:$0]  %s450, 512, %s5, [#allocation7], 128, 128, 8
    $region29: #{lstm_cell_pallas.1} parent=1 // pred_fallthru
      _
    // Predicated region
    $region30: #{lstm_cell_pallas.1} parent=1 // pred_check
      _
    $region31: #{lstm_cell_pallas.1} parent=1 // pred_check_branch
      %457 = sbr.rel (0) target = $region33
    $region32: #{lstm_cell_pallas.1} parent=1 // pred_region
      %458 = dma.done [#allocation4], 512
    $region33: #{lstm_cell_pallas.1} parent=1 // pred_fallthru
      _
    // Predicated region
    $region34: #{lstm_cell_pallas.1} parent=1 // pred_check
      _
    $region35: #{lstm_cell_pallas.1} parent=1 // pred_check_branch
      %460 = sbr.rel (0) target = $region37
    $region36: #{lstm_cell_pallas.1} parent=1 // pred_region
      %461 = dma.done [#allocation7], 512
    $region37: #{lstm_cell_pallas.1} parent=1 // pred_fallthru
      _
    %462 = vsyncpa [#allocation3], 1
    %463 = vsyncpa [#allocation4], 1
    %464 = vsyncpa [#allocation7], 1

</llo_original>
